<compile_context>
chip_gen: v7x
topology: tpu7x:2x2x1
jax: 0.10.0
libtpu: 0.0.40
codegen_flags: <defaults>
</compile_context>

<pallas_src>
import functools

import jax
import jax.numpy as jnp
from jax import lax
from jax.experimental import pallas as pl
from jax.experimental.pallas import tpu as pltpu


def _sepconv_kernel(x_ref, dw_ref, pw_ref, mask_ref, o_ref, *,
                    batch_tile, Cin, Cout, kh, kw, pad, W, mxu_dtype):
    """One batch-tile per grid step; H*W (possibly lane-padded) is the lane axis.

    x_ref   : (r_in,  P)      r_in  = batch_tile * Cin   flattened input images
    dw_ref  : (r_in,  kh*kw)  per-row depthwise taps (channel pattern tiled over batch)
    pw_ref  : (Cout,  Cin)    pointwise 1x1 weights (no block-diagonal expansion)
    mask_ref: (kh*kw, P)      precomputed f32 edge-validity masks (padding=1)
    o_ref   : (r_out, P)      r_out = batch_tile * Cout  flattened outputs (NCHW order)
    """
    P = x_ref.shape[1]

    # Hoisted loads / casts — once per grid step, not per tap.
    xv = x_ref[...].astype(jnp.float32)        # (r_in, P)   f32 VPU math (v5e-safe)
    dwf = dw_ref[...].astype(jnp.float32)      # (r_in, kh*kw)
    pwf = pw_ref[...].astype(jnp.float32)      # (Cout, Cin)

    # ---- depthwise kh x kw conv: roll-and-accumulate over the taps (XLU + VPU) ----
    c0 = pad * kw + pad                        # center tap (di = dj = 0)
    acc = xv * dwf[:, c0:c0 + 1]               # seed from center tap (mask == 1 there)

    for i in range(kh):
        for j in range(kw):
            t = i * kw + j
            if t == c0:
                continue
            di = i - pad
            dj = j - pad
            off = di * W + dj
            # Neighbour pixel at flat offset +off; cyclic wrap of the roll is harmless
            # because every out-of-image neighbour is zeroed by the precomputed mask.
            shifted = pltpu.roll(xv, shift=(-off) % P, axis=1)
            m = mask_ref[t:t + 1, :]                                 # (1, P), f32
            acc = acc + (shifted * m) * dwf[:, t:t + 1]              # mask first, then row-bcast

    # ---- pointwise 1x1 conv: one small MXU dot per batch element in the tile ----
    # (linear in batch_tile — no block-diagonal zeros fed to the MXU)
    pw_op = pwf.astype(mxu_dtype)
    for b in range(batch_tile):
        a_b = acc[b * Cin:(b + 1) * Cin, :].astype(mxu_dtype)        # (Cin, P)
        o_b = jnp.dot(pw_op, a_b, preferred_element_type=jnp.float32)  # (Cout, P)
        o_ref[b * Cout:(b + 1) * Cout, :] = o_b.astype(o_ref.dtype)


def _step_vmem_bytes(batch_tile, Cin, Cout, P):
    """Rough per-grid-step VMEM estimate (f32 upper bound)."""
    r_in = batch_tile * Cin
    r_out = batch_tile * Cout
    pipeline = 2 * (r_in + r_out) * P * 4          # double-buffered in/out blocks
    compute = (3 * r_in + r_out) * P * 4           # xv, acc, shifted temp, out temp
    return pipeline + compute


def _pick_batch_tile(N, Cin, Cout, P, sublane, budget):
    """Largest legal batch tile that fits the VMEM budget; prefer >=2 steps for big tiles."""
    legal = []
    for bt in range(N, 0, -1):
        if N % bt:
            continue
        nb = N // bt
        # (8,128) rule: with >1 block the sublane extent of each block must be a
        # multiple of the sublane packing (8 for f32, 16 for bf16).
        if nb > 1 and ((bt * Cin) % sublane or (bt * Cout) % sublane):
            continue
        legal.append(bt)
    if not legal:
        return N
    fitting = [bt for bt in legal if _step_vmem_bytes(bt, Cin, Cout, P) <= budget]
    if not fitting:
        return min(legal)
    best = max(fitting)
    # For non-trivial problems prefer >=2 "parallel" steps (v7x two-TC sharding,
    # DMA/compute overlap).  Tiny problems stay single-step (launch-overhead bound).
    multi = [bt for bt in fitting if N // bt >= 2]
    if multi and _step_vmem_bytes(best, Cin, Cout, P) > (2 << 20):
        return max(multi)
    return best


def separable_conv2d(x_nchw, dw_weight, pw_weight, *, batch_tile=None,
                     vmem_budget_bytes=24 << 20):
    """SeparableConv2d forward (depthwise 3x3 pad=1, then pointwise 1x1), NCHW in/out.

    x_nchw   : (N, Cin, H, W)     PyTorch layout (kept — no transposes anywhere)
    dw_weight: (Cin, 1, kh, kw)   nn.Conv2d(groups=Cin) weight
    pw_weight: (Cout, Cin, 1, 1)  nn.Conv2d(kernel_size=1) weight
    returns  : (N, Cout, H, W)
    """
    N, Cin, H, W = x_nchw.shape
    Cout = pw_weight.shape[0]
    kh, kw = dw_weight.shape[2], dw_weight.shape[3]
    pad = 1  # hardcoded padding=1 in the PyTorch module
    # TODO(synk): only the 'same'-size case (3x3 kernel with padding=1) is implemented.
    assert kh == 2 * pad + 1 and kw == 2 * pad + 1, "kernel assumes 3x3 / padding=1"

    P = H * W
    P_pad = ((P + 127) // 128) * 128               # keep output stores lane-dense

    itemsize = jnp.dtype(x_nchw.dtype).itemsize
    sublane = 8 if itemsize >= 4 else (16 if itemsize == 2 else 32)

    if batch_tile is None:
        batch_tile = _pick_batch_tile(N, Cin, Cout, P_pad, sublane, vmem_budget_bytes)
    assert N % batch_tile == 0
    num_blocks = N // batch_tile
    r_in = batch_tile * Cin
    r_out = batch_tile * Cout
    assert num_blocks == 1 or (r_in % sublane == 0 and r_out % sublane == 0), (
        f"batch_tile={batch_tile}: block sublane extents ({r_in},{r_out}) must be "
        f"multiples of {sublane} when the grid has more than one step")

    # Free bitcast reshape (contiguous dims): rows = (n, c) pairs, lanes = h*W + w.
    x2d = x_nchw.reshape(N * Cin, P)
    if P_pad != P:
        x2d = jnp.pad(x2d, ((0, 0), (0, P_pad - P)))

    # Tiny weight prep — O(k^2*C) and O(Cout*Cin) elements, negligible glue.
    dw_taps = dw_weight[:, 0].reshape(Cin, kh * kw)       # (Cin, k*k), tap = i*kw + j
    dw_rows = jnp.tile(dw_taps, (batch_tile, 1))          # (r_in, k*k): row r -> chan r%Cin
    pw = pw_weight[:, :, 0, 0]                            # (Cout, Cin)

    # Precompute the padding=1 edge masks once (hoisted out of the kernel entirely).
    lane = jnp.arange(P_pad, dtype=jnp.int32)
    h_idx = lane // W
    w_idx = lane % W
    in_img = lane < P
    mask_rows = []
    for i in range(kh):
        for j in range(kw):
            di, dj = i - pad, j - pad
            valid = ((h_idx + di >= 0) & (h_idx + di < H) &
                     (w_idx + dj >= 0) & (w_idx + dj < W) & in_img)
            mask_rows.append(valid)
    masks = jnp.stack(mask_rows, axis=0).astype(jnp.float32)   # (kh*kw, P_pad)

    # bf16 MXU operands only when the input itself is bf16 (f32 accumulate kept).
    mxu_dtype = jnp.bfloat16 if x_nchw.dtype == jnp.bfloat16 else jnp.float32

    kernel = functools.partial(
        _sepconv_kernel, batch_tile=batch_tile, Cin=Cin, Cout=Cout,
        kh=kh, kw=kw, pad=pad, W=W, mxu_dtype=mxu_dtype)

    vmem_limit = int(min(64 << 20,
                         max(32 << 20, 2 * _step_vmem_bytes(batch_tile, Cin, Cout, P_pad))))

    out2d = pl.pallas_call(
        kernel,
        out_shape=jax.ShapeDtypeStruct((N * Cout, P_pad), x_nchw.dtype),
        grid_spec=pltpu.PrefetchScalarGridSpec(
            num_scalar_prefetch=0,
            grid=(num_blocks,),
            in_specs=[
                pl.BlockSpec((r_in, P_pad), lambda b: (b, 0)),
                pl.BlockSpec((r_in, kh * kw), lambda b: (0, 0)),   # weights stay resident
                pl.BlockSpec((Cout, Cin), lambda b: (0, 0)),
                pl.BlockSpec((kh * kw, P_pad), lambda b: (0, 0)),  # masks stay resident
            ],
            out_specs=pl.BlockSpec((r_out, P_pad), lambda b: (b, 0)),  # lane-dense stores
        ),
        compiler_params=pltpu.CompilerParams(
            dimension_semantics=("parallel",),       # shards across TCs when num_blocks > 1
            vmem_limit_bytes=vmem_limit,
        ),
    )(x2d, dw_rows, pw, masks)

    if P_pad != P:
        out2d = out2d[:, :P]
    # Free reshape back to NCHW: rows already (n, cout)-major, lanes (h, w)-major.
    return out2d.reshape(N, Cout, H, W)


def _reference(x_nchw, dw_weight, pw_weight):
    """Pure-JAX reference (lax conv) matching PyTorch semantics."""
    Cin = x_nchw.shape[1]
    dw_out = lax.conv_general_dilated(
        x_nchw.astype(jnp.float32), dw_weight.astype(jnp.float32),
        window_strides=(1, 1), padding=((1, 1), (1, 1)),
        dimension_numbers=("NCHW", "OIHW", "NCHW"),
        feature_group_count=Cin)
    pw_out = lax.conv_general_dilated(
        dw_out, pw_weight.astype(jnp.float32),
        window_strides=(1, 1), padding="VALID",
        dimension_numbers=("NCHW", "OIHW", "NCHW"))
    return pw_out


if __name__ == "__main__":
    # Small shapes consistent with the module: N=2, Cin=4, Cout=8, H=W=16, k=3.
    N, Cin, Cout, H, W, K = 2, 4, 8, 16, 16, 3

    key = jax.random.PRNGKey(0)
    kx, kd, kp = jax.random.split(key, 3)
    x = jax.random.normal(kx, (N, Cin, H, W), dtype=jnp.float32)
    dw_weight = jax.random.normal(kd, (Cin, 1, K, K), dtype=jnp.float32) * 0.1
    pw_weight = jax.random.normal(kp, (Cout, Cin, 1, 1), dtype=jnp.float32) * 0.1

    out = jax.block_until_ready(separable_conv2d(x, dw_weight, pw_weight))
    ref = jax.block_until_ready(_reference(x, dw_weight, pw_weight))

    assert out.shape == (N, Cout, H, W), out.shape
    assert jnp.allclose(out, ref, atol=1e-3, rtol=1e-3), "mismatch vs reference"

    print("KERNEL_OK")
</pallas_src>

<mosaic_0001>
module attributes {stable_mosaic.version = 11 : i64} {
  func.func @_sepconv_kernel(%arg0: i32, %arg1: memref<8x256xf32, #tpu.memory_space<vmem>>, %arg2: memref<8x9xf32, #tpu.memory_space<vmem>>, %arg3: memref<8x4xf32, #tpu.memory_space<vmem>>, %arg4: memref<9x256xf32, #tpu.memory_space<vmem>>, %arg5: memref<16x256xf32, #tpu.memory_space<vmem>>) attributes {dimension_semantics = [#tpu.dimension_semantics<parallel>], iteration_bounds = array<i64: 1>, scalar_prefetch = 0 : i64, scratch_operands = 0 : i64, tpu.core_type = #tpu.core_type<tc>, window_params = [{transform_indices = @transform_0, window_bounds = array<i64: 8, 256>}, {pipeline_mode = #tpu.pipeline_mode<synchronous>, transform_indices = @transform_1, window_bounds = array<i64: 8, 9>}, {pipeline_mode = #tpu.pipeline_mode<synchronous>, transform_indices = @transform_2, window_bounds = array<i64: 8, 4>}, {pipeline_mode = #tpu.pipeline_mode<synchronous>, transform_indices = @transform_3, window_bounds = array<i64: 9, 256>}, {transform_indices = @transform_4, window_bounds = array<i64: 16, 256>}]} {
    %c0 = arith.constant 0 : index
    %c0_0 = arith.constant 0 : index
    %0 = vector.load %arg1[%c0, %c0_0] : memref<8x256xf32, #tpu.memory_space<vmem>>, vector<8x256xf32>
    %c0_1 = arith.constant 0 : index
    %c0_2 = arith.constant 0 : index
    %1 = vector.load %arg2[%c0_1, %c0_2] : memref<8x9xf32, #tpu.memory_space<vmem>>, vector<8x9xf32>
    %c0_3 = arith.constant 0 : index
    %c0_4 = arith.constant 0 : index
    %2 = vector.load %arg3[%c0_3, %c0_4] : memref<8x4xf32, #tpu.memory_space<vmem>>, vector<8x4xf32>
    %3 = vector.extract_strided_slice %1 {offsets = [0, 4], sizes = [8, 1], strides = [1, 1]} : vector<8x9xf32> to vector<8x1xf32>
    %4 = vector.broadcast %3 : vector<8x1xf32> to vector<8x256xf32>
    %5 = arith.mulf %0, %4 : vector<8x256xf32>
    %c17_i32 = arith.constant 17 : i32
    %6 = tpu.dynamic_rotate %0 by %c17_i32 dim 1 : vector<8x256xf32>, i32 -> vector<8x256xf32>
    %c0_5 = arith.constant 0 : index
    %c0_6 = arith.constant 0 : index
    %7 = vector.load %arg4[%c0_5, %c0_6] : memref<9x256xf32, #tpu.memory_space<vmem>>, vector<1x256xf32>
    %8 = vector.broadcast %7 : vector<1x256xf32> to vector<8x256xf32>
    %9 = arith.mulf %6, %8 : vector<8x256xf32>
    %10 = vector.extract_strided_slice %1 {offsets = [0, 0], sizes = [8, 1], strides = [1, 1]} : vector<8x9xf32> to vector<8x1xf32>
    %11 = vector.broadcast %10 : vector<8x1xf32> to vector<8x256xf32>
    %12 = arith.mulf %9, %11 : vector<8x256xf32>
    %13 = arith.addf %5, %12 : vector<8x256xf32>
    %c16_i32 = arith.constant 16 : i32
    %14 = tpu.dynamic_rotate %0 by %c16_i32 dim 1 : vector<8x256xf32>, i32 -> vector<8x256xf32>
    %c1 = arith.constant 1 : index
    %c0_7 = arith.constant 0 : index
    %15 = vector.load %arg4[%c1, %c0_7] : memref<9x256xf32, #tpu.memory_space<vmem>>, vector<1x256xf32>
    %16 = vector.broadcast %15 : vector<1x256xf32> to vector<8x256xf32>
    %17 = arith.mulf %14, %16 : vector<8x256xf32>
    %18 = vector.extract_strided_slice %1 {offsets = [0, 1], sizes = [8, 1], strides = [1, 1]} : vector<8x9xf32> to vector<8x1xf32>
    %19 = vector.broadcast %18 : vector<8x1xf32> to vector<8x256xf32>
    %20 = arith.mulf %17, %19 : vector<8x256xf32>
    %21 = arith.addf %13, %20 : vector<8x256xf32>
    %c15_i32 = arith.constant 15 : i32
    %22 = tpu.dynamic_rotate %0 by %c15_i32 dim 1 : vector<8x256xf32>, i32 -> vector<8x256xf32>
    %c2 = arith.constant 2 : index
    %c0_8 = arith.constant 0 : index
    %23 = vector.load %arg4[%c2, %c0_8] : memref<9x256xf32, #tpu.memory_space<vmem>>, vector<1x256xf32>
    %24 = vector.broadcast %23 : vector<1x256xf32> to vector<8x256xf32>
    %25 = arith.mulf %22, %24 : vector<8x256xf32>
    %26 = vector.extract_strided_slice %1 {offsets = [0, 2], sizes = [8, 1], strides = [1, 1]} : vector<8x9xf32> to vector<8x1xf32>
    %27 = vector.broadcast %26 : vector<8x1xf32> to vector<8x256xf32>
    %28 = arith.mulf %25, %27 : vector<8x256xf32>
    %29 = arith.addf %21, %28 : vector<8x256xf32>
    %c1_i32 = arith.constant 1 : i32
    %30 = tpu.dynamic_rotate %0 by %c1_i32 dim 1 : vector<8x256xf32>, i32 -> vector<8x256xf32>
    %c3 = arith.constant 3 : index
    %c0_9 = arith.constant 0 : index
    %31 = vector.load %arg4[%c3, %c0_9] : memref<9x256xf32, #tpu.memory_space<vmem>>, vector<1x256xf32>
    %32 = vector.broadcast %31 : vector<1x256xf32> to vector<8x256xf32>
    %33 = arith.mulf %30, %32 : vector<8x256xf32>
    %34 = vector.extract_strided_slice %1 {offsets = [0, 3], sizes = [8, 1], strides = [1, 1]} : vector<8x9xf32> to vector<8x1xf32>
    %35 = vector.broadcast %34 : vector<8x1xf32> to vector<8x256xf32>
    %36 = arith.mulf %33, %35 : vector<8x256xf32>
    %37 = arith.addf %29, %36 : vector<8x256xf32>
    %c255_i32 = arith.constant 255 : i32
    %38 = tpu.dynamic_rotate %0 by %c255_i32 dim 1 : vector<8x256xf32>, i32 -> vector<8x256xf32>
    %c5 = arith.constant 5 : index
    %c0_10 = arith.constant 0 : index
    %39 = vector.load %arg4[%c5, %c0_10] : memref<9x256xf32, #tpu.memory_space<vmem>>, vector<1x256xf32>
    %40 = vector.broadcast %39 : vector<1x256xf32> to vector<8x256xf32>
    %41 = arith.mulf %38, %40 : vector<8x256xf32>
    %42 = vector.extract_strided_slice %1 {offsets = [0, 5], sizes = [8, 1], strides = [1, 1]} : vector<8x9xf32> to vector<8x1xf32>
    %43 = vector.broadcast %42 : vector<8x1xf32> to vector<8x256xf32>
    %44 = arith.mulf %41, %43 : vector<8x256xf32>
    %45 = arith.addf %37, %44 : vector<8x256xf32>
    %c241_i32 = arith.constant 241 : i32
    %46 = tpu.dynamic_rotate %0 by %c241_i32 dim 1 : vector<8x256xf32>, i32 -> vector<8x256xf32>
    %c6 = arith.constant 6 : index
    %c0_11 = arith.constant 0 : index
    %47 = vector.load %arg4[%c6, %c0_11] : memref<9x256xf32, #tpu.memory_space<vmem>>, vector<1x256xf32>
    %48 = vector.broadcast %47 : vector<1x256xf32> to vector<8x256xf32>
    %49 = arith.mulf %46, %48 : vector<8x256xf32>
    %50 = vector.extract_strided_slice %1 {offsets = [0, 6], sizes = [8, 1], strides = [1, 1]} : vector<8x9xf32> to vector<8x1xf32>
    %51 = vector.broadcast %50 : vector<8x1xf32> to vector<8x256xf32>
    %52 = arith.mulf %49, %51 : vector<8x256xf32>
    %53 = arith.addf %45, %52 : vector<8x256xf32>
    %c240_i32 = arith.constant 240 : i32
    %54 = tpu.dynamic_rotate %0 by %c240_i32 dim 1 : vector<8x256xf32>, i32 -> vector<8x256xf32>
    %c7 = arith.constant 7 : index
    %c0_12 = arith.constant 0 : index
    %55 = vector.load %arg4[%c7, %c0_12] : memref<9x256xf32, #tpu.memory_space<vmem>>, vector<1x256xf32>
    %56 = vector.broadcast %55 : vector<1x256xf32> to vector<8x256xf32>
    %57 = arith.mulf %54, %56 : vector<8x256xf32>
    %58 = vector.extract_strided_slice %1 {offsets = [0, 7], sizes = [8, 1], strides = [1, 1]} : vector<8x9xf32> to vector<8x1xf32>
    %59 = vector.broadcast %58 : vector<8x1xf32> to vector<8x256xf32>
    %60 = arith.mulf %57, %59 : vector<8x256xf32>
    %61 = arith.addf %53, %60 : vector<8x256xf32>
    %c239_i32 = arith.constant 239 : i32
    %62 = tpu.dynamic_rotate %0 by %c239_i32 dim 1 : vector<8x256xf32>, i32 -> vector<8x256xf32>
    %c8 = arith.constant 8 : index
    %c0_13 = arith.constant 0 : index
    %63 = vector.load %arg4[%c8, %c0_13] : memref<9x256xf32, #tpu.memory_space<vmem>>, vector<1x256xf32>
    %64 = vector.broadcast %63 : vector<1x256xf32> to vector<8x256xf32>
    %65 = arith.mulf %62, %64 : vector<8x256xf32>
    %66 = vector.extract_strided_slice %1 {offsets = [0, 8], sizes = [8, 1], strides = [1, 1]} : vector<8x9xf32> to vector<8x1xf32>
    %67 = vector.broadcast %66 : vector<8x1xf32> to vector<8x256xf32>
    %68 = arith.mulf %65, %67 : vector<8x256xf32>
    %69 = arith.addf %61, %68 : vector<8x256xf32>
    %70 = vector.extract_strided_slice %69 {offsets = [0, 0], sizes = [4, 256], strides = [1, 1]} : vector<8x256xf32> to vector<4x256xf32>
    %cst = arith.constant dense<0.000000e+00> : vector<8x256xf32>
    %71 = tpu.matmul %2, %70, %cst {dimension_numbers = #tpu.dot_dimension_numbers<[1], [0], [0], [1], [0, 0, 1, 1], [], []>} : vector<8x4xf32>, vector<4x256xf32>, vector<8x256xf32> -> vector<8x256xf32>
    %c0_14 = arith.constant 0 : index
    %c0_15 = arith.constant 0 : index
    %72 = vector.load %arg5[%c0_14, %c0_15] : memref<16x256xf32, #tpu.memory_space<vmem>>, vector<8x256xf32>
    tpu.vector_store %arg5[%c0_14, %c0_15], %71 {strides = array<i32>} : memref<16x256xf32, #tpu.memory_space<vmem>>, vector<8x256xf32>,
    %73 = vector.extract_strided_slice %69 {offsets = [4, 0], sizes = [4, 256], strides = [1, 1]} : vector<8x256xf32> to vector<4x256xf32>
    %cst_16 = arith.constant dense<0.000000e+00> : vector<8x256xf32>
    %74 = tpu.matmul %2, %73, %cst_16 {dimension_numbers = #tpu.dot_dimension_numbers<[1], [0], [0], [1], [0, 0, 1, 1], [], []>} : vector<8x4xf32>, vector<4x256xf32>, vector<8x256xf32> -> vector<8x256xf32>
    %c8_17 = arith.constant 8 : index
    %c0_18 = arith.constant 0 : index
    %75 = vector.load %arg5[%c8_17, %c0_18] : memref<16x256xf32, #tpu.memory_space<vmem>>, vector<8x256xf32>
    tpu.vector_store %arg5[%c8_17, %c0_18], %74 {strides = array<i32>} : memref<16x256xf32, #tpu.memory_space<vmem>>, vector<8x256xf32>,
    return
  }
  func.func @transform_0(%arg0: i32) -> (i32, i32) {
    %c0_i32 = arith.constant 0 : i32
    %c0_i32_0 = arith.constant 0 : i32
    return %arg0, %c0_i32 : i32, i32
  }
  func.func @transform_1(%arg0: i32) -> (i32, i32) {
    %c0_i32 = arith.constant 0 : i32
    %c0_i32_0 = arith.constant 0 : i32
    %c0_i32_1 = arith.constant 0 : i32
    return %c0_i32, %c0_i32_0 : i32, i32
  }
  func.func @transform_2(%arg0: i32) -> (i32, i32) {
    %c0_i32 = arith.constant 0 : i32
    %c0_i32_0 = arith.constant 0 : i32
    %c0_i32_1 = arith.constant 0 : i32
    return %c0_i32, %c0_i32_0 : i32, i32
  }
  func.func @transform_3(%arg0: i32) -> (i32, i32) {
    %c0_i32 = arith.constant 0 : i32
    %c0_i32_0 = arith.constant 0 : i32
    %c0_i32_1 = arith.constant 0 : i32
    return %c0_i32, %c0_i32_0 : i32, i32
  }
  func.func @transform_4(%arg0: i32) -> (i32, i32) {
    %c0_i32 = arith.constant 0 : i32
    %c0_i32_0 = arith.constant 0 : i32
    return %arg0, %c0_i32 : i32, i32
  }
}

</mosaic_0001>

<llo_original>
// kernel: tpu_custom_call.1
$region0: #{tpu_custom_call.1}
  #allocation0 [shape = 'u32[]', space=smem, size = 0x4, offset = 0x4, fixed_abs, tag = 'smem constant byte address 0x4 - core index']
  #allocation1 [shape = 'u32[144,128]{1,0:T(1,128)}', space=vmem, size = 0x12000, scoped, tag = 'internal scratch']
  %s0 = inlined_call_operand.hbm [shape: f32[8,256], index: 0, kind: input, shape index: {}]
  %s1 = inlined_call_operand.vmem [shape: f32[8,9], index: 1, kind: input, shape index: {}]
  %s2 = inlined_call_operand.vmem [shape: f32[8,4], index: 2, kind: input, shape index: {}]
  %s3 = inlined_call_operand.hbm [shape: f32[9,256], index: 3, kind: input, shape index: {}]
  %s4 = inlined_call_operand.hbm [shape: f32[16,256], index: 4, kind: output, shape index: {}]
  %s5 = sld [smem:[#allocation0]]
  $region34: #{tpu_custom_call.1} parent=0
    _
  %s7 = ssub.s32 1, %s5
  %s8 = scalar_select 0, %s7, %s5
  $region1: #{tpu_custom_call.1} parent=0
    #allocation2 [shape = 'u8[8192]{0}', space=vmem, size = 0x2000, scoped, tag = 'input window, operand 0, single buffered']
    #allocation3 [shape = 's32[1]{0}', space=sflag, size = 0x4, scoped, tag = 'scoped memory for tpu_custom_call.1']
    #allocation4 [shape = 's32[1]{0}', space=sflag, size = 0x4, scoped, tag = 'scoped memory for tpu_custom_call.1']
    #allocation5 [shape = 'u8[16384]{0}', space=vmem, size = 0x4000, scoped, tag = 'input window, operand 3, single buffered']
    #allocation6 [shape = 's32[1]{0}', space=sflag, size = 0x4, scoped, tag = 'scoped memory for tpu_custom_call.1']
    #allocation7 [shape = 'u8[16384]{0}', space=vmem, size = 0x4000, scoped, tag = 'output window, operand 0, single buffered']
    %9 = vsyncpa [#allocation3], 0
    %10 = vsyncpa [#allocation6], 0
    %11 = vsyncpa [#allocation4], 0
    // Predicated region
    $region2: #{tpu_custom_call.1} parent=1 // pred_check
      _
    $region3: #{tpu_custom_call.1} parent=1 // pred_check_branch
      %13 = sbr.rel (0) target = $region5
    $region4: #{tpu_custom_call.1} parent=1 // pred_region
      %s15 = ssub.s32 256, 256
      %16 = vsyncadd [#allocation3], %s15
      %s18 = sshll.u32 [#allocation2], 4
      %s19 = int_to_ptr.vmem [resolvable:$true] %s18
      %21 = dma.hbm_to_vmem [thread:$0]  %s0, 256, %s19, [#allocation3]
    $region5: #{tpu_custom_call.1} parent=1 // pred_fallthru
      _
    // Predicated region
    $region6: #{tpu_custom_call.1} parent=1 // pred_check
      _
    $region7: #{tpu_custom_call.1} parent=1 // pred_check_branch
      %23 = sbr.rel (0) target = $region9
    $region8: #{tpu_custom_call.1} parent=1 // pred_region
      _
    $region9: #{tpu_custom_call.1} parent=1 // pred_fallthru
      _
    // Predicated region
    $region10: #{tpu_custom_call.1} parent=1 // pred_check
      _
    $region11: #{tpu_custom_call.1} parent=1 // pred_check_branch
      %25 = sbr.rel (0) target = $region13
    $region12: #{tpu_custom_call.1} parent=1 // pred_region
      _
    $region13: #{tpu_custom_call.1} parent=1 // pred_fallthru
      _
    // Predicated region
    $region14: #{tpu_custom_call.1} parent=1 // pred_check
      _
    $region15: #{tpu_custom_call.1} parent=1 // pred_check_branch
      %27 = sbr.rel (0) target = $region17
    $region16: #{tpu_custom_call.1} parent=1 // pred_region
      %s29 = ssub.s32 512, 512
      %30 = vsyncadd [#allocation6], %s29
      %s31 = sshll.u32 [#allocation5], 4
      %s32 = int_to_ptr.vmem [resolvable:$true] %s31
      %37 = dma.hbm_to_vmem [thread:$0]  %s3, 512, %s32, [#allocation6], 256, 256, 16
    $region17: #{tpu_custom_call.1} parent=1 // pred_fallthru
      _
    // Predicated region
    $region18: #{tpu_custom_call.1} parent=1 // pred_check
      _
    $region19: #{tpu_custom_call.1} parent=1 // pred_check_branch
      %39 = sbr.rel (0) target = $region21
    $region20: #{tpu_custom_call.1} parent=1 // pred_region
      %40 = dma.done [#allocation3], 256
    $region21: #{tpu_custom_call.1} parent=1 // pred_fallthru
      _
    // Predicated region
    $region22: #{tpu_custom_call.1} parent=1 // pred_check
      _
    $region23: #{tpu_custom_call.1} parent=1 // pred_check_branch
      %42 = sbr.rel (0) target = $region25
    $region24: #{tpu_custom_call.1} parent=1 // pred_region
      %43 = dma.done [#allocation6], 512
    $region25: #{tpu_custom_call.1} parent=1 // pred_fallthru
      _
    %v44 = vld [vmem:[#allocation2] sm:$0xff]
    %v45 = vld [vmem:[#allocation2 + $0x8] sm:$0xff]
    %v46 = vld [vmem:[%s1] sm:$0xff]
    %v47 = vld [vmem:[%s2] sm:$0xff]
    %49 = vset.pattern.permute.xlu0 4
    %50 = vperm.xlu0 %49, %v46
    %v51 = vpop.permute.xlu0 %50
    %v53 = vmul.f32 %v44, %v51
    %v54 = vmul.f32 %v45, %v51
    %55 = vrot.lane.b32.xlu0 %v44, 17
    %v56 = vpop.permute.xlu0 %55
    %57 = vrot.lane.b32.xlu0 %v45, 17
    %v58 = vpop.permute.xlu0 %57
    %v59 = vlaneseq
    %v60 = vand.u32 %v59, 127
    %vm61 = vcmp.lt.s32.totalorder %v60, 17
    %v62 = vsel %vm61, %v56, %v58
    %v63 = vsel %vm61, %v58, %v56
    %v64 = vld [vmem:[#allocation5] ss:$8 sm:$0x3]
    %v66 = vlaneseq
    %v67 = vshrl.u32 %v66, 7
    %v68 = vsub.s32 0, %v67
    %v69 = vrot.slane %v64, %v68
    %v70 = vlaneseq
    %v71 = vshrl.u32 %v70, 7
    %v72 = vsub.s32 1, %v71
    %v73 = vrot.slane %v64, %v72
    %v76 = vmul.f32 %v63, %v69
    %v77 = vmul.f32 %v62, %v73
    %78 = vset.pattern.permute.xlu0 0
    %79 = vperm.xlu0 %78, %v46
    %v80 = vpop.permute.xlu0 %79
    %v82 = vmul.f32 %v76, %v80
    %v83 = vmul.f32 %v77, %v80
    %v84 = vadd.f32 %v53, %v82
    %v85 = vadd.f32 %v54, %v83
    %86 = vrot.lane.b32.xlu0 %v44, 16
    %v87 = vpop.permute.xlu0 %86
    %88 = vrot.lane.b32.xlu0 %v45, 16
    %v89 = vpop.permute.xlu0 %88
    %vm90 = vcmp.lt.s32.totalorder %v60, 16
    %v91 = vsel %vm90, %v87, %v89
    %v92 = vsel %vm90, %v89, %v87
    %s93 = scalar_lea.vmem [#allocation5], 1
    %v94 = vld [vmem:[%s93] ss:$8 sm:$0x3]
    %v96 = vlaneseq
    %v97 = vshrl.u32 %v96, 7
    %v98 = vsub.s32 0, %v97
    %v99 = vrot.slane %v94, %v98
    %v100 = vlaneseq
    %v101 = vshrl.u32 %v100, 7
    %v102 = vsub.s32 1, %v101
    %v103 = vrot.slane %v94, %v102
    %v106 = vmul.f32 %v92, %v99
    %v107 = vmul.f32 %v91, %v103
    %108 = vset.pattern.permute.xlu0 1
    %109 = vperm.xlu0 %108, %v46
    %v110 = vpop.permute.xlu0 %109
    %v112 = vmul.f32 %v106, %v110
    %v113 = vmul.f32 %v107, %v110
    %v114 = vadd.f32 %v84, %v112
    %v115 = vadd.f32 %v85, %v113
    %116 = vrot.lane.b32.xlu0 %v44, 15
    %v117 = vpop.permute.xlu0 %116
    %118 = vrot.lane.b32.xlu0 %v45, 15
    %v119 = vpop.permute.xlu0 %118
    %vm120 = vcmp.lt.s32.totalorder %v60, 15
    %v121 = vsel %vm120, %v117, %v119
    %v122 = vsel %vm120, %v119, %v117
    %s123 = scalar_lea.vmem [#allocation5], 2
    %v124 = vld [vmem:[%s123] ss:$8 sm:$0x3]
    %v126 = vlaneseq
    %v127 = vshrl.u32 %v126, 7
    %v128 = vsub.s32 0, %v127
    %v129 = vrot.slane %v124, %v128
    %v130 = vlaneseq
    %v131 = vshrl.u32 %v130, 7
    %v132 = vsub.s32 1, %v131
    %v133 = vrot.slane %v124, %v132
    %v136 = vmul.f32 %v122, %v129
    %v137 = vmul.f32 %v121, %v133
    %138 = vset.pattern.permute.xlu0 2
    %139 = vperm.xlu0 %138, %v46
    %v140 = vpop.permute.xlu0 %139
    %v142 = vmul.f32 %v136, %v140
    %v143 = vmul.f32 %v137, %v140
    %v144 = vadd.f32 %v114, %v142
    %v145 = vadd.f32 %v115, %v143
    %146 = vrot.lane.b32.xlu0 %v44, 1
    %v147 = vpop.permute.xlu0 %146
    %148 = vrot.lane.b32.xlu0 %v45, 1
    %v149 = vpop.permute.xlu0 %148
    %vm150 = vcmp.lt.s32.totalorder %v60, 1
    %v151 = vsel %vm150, %v147, %v149
    %v152 = vsel %vm150, %v149, %v147
    %s153 = scalar_lea.vmem [#allocation5], 3
    %v154 = vld [vmem:[%s153] ss:$8 sm:$0x3]
    %v156 = vlaneseq
    %v157 = vshrl.u32 %v156, 7
    %v158 = vsub.s32 0, %v157
    %v159 = vrot.slane %v154, %v158
    %v160 = vlaneseq
    %v161 = vshrl.u32 %v160, 7
    %v162 = vsub.s32 1, %v161
    %v163 = vrot.slane %v154, %v162
    %v166 = vmul.f32 %v152, %v159
    %v167 = vmul.f32 %v151, %v163
    %168 = vset.pattern.permute.xlu0 3
    %169 = vperm.xlu0 %168, %v46
    %v170 = vpop.permute.xlu0 %169
    %v172 = vmul.f32 %v166, %v170
    %v173 = vmul.f32 %v167, %v170
    %v174 = vadd.f32 %v144, %v172
    %v175 = vadd.f32 %v145, %v173
    %176 = vrot.lane.b32.xlu0 %v44, 127
    %v177 = vpop.permute.xlu0 %176
    %178 = vrot.lane.b32.xlu0 %v45, 127
    %v179 = vpop.permute.xlu0 %178
    %vm180 = vcmp.lt.s32.totalorder %v60, 127
    %v181 = vsel %vm180, %v177, %v179
    %v182 = vsel %vm180, %v179, %v177
    %s183 = scalar_lea.vmem [#allocation5], 5
    %v184 = vld [vmem:[%s183] ss:$8 sm:$0x3]
    %v186 = vlaneseq
    %v187 = vshrl.u32 %v186, 7
    %v188 = vsub.s32 0, %v187
    %v189 = vrot.slane %v184, %v188
    %v190 = vlaneseq
    %v191 = vshrl.u32 %v190, 7
    %v192 = vsub.s32 1, %v191
    %v193 = vrot.slane %v184, %v192
    %v196 = vmul.f32 %v181, %v189
    %v197 = vmul.f32 %v182, %v193
    %198 = vset.pattern.permute.xlu0 5
    %199 = vperm.xlu0 %198, %v46
    %v200 = vpop.permute.xlu0 %199
    %v202 = vmul.f32 %v196, %v200
    %v203 = vmul.f32 %v197, %v200
    %v204 = vadd.f32 %v174, %v202
    %v205 = vadd.f32 %v175, %v203
    %206 = vrot.lane.b32.xlu0 %v44, 113
    %v207 = vpop.permute.xlu0 %206
    %208 = vrot.lane.b32.xlu0 %v45, 113
    %v209 = vpop.permute.xlu0 %208
    %vm210 = vcmp.lt.s32.totalorder %v60, 113
    %v211 = vsel %vm210, %v207, %v209
    %v212 = vsel %vm210, %v209, %v207
    %s213 = scalar_lea.vmem [#allocation5], 6
    %v214 = vld [vmem:[%s213] ss:$8 sm:$0x3]
    %v216 = vlaneseq
    %v217 = vshrl.u32 %v216, 7
    %v218 = vsub.s32 0, %v217
    %v219 = vrot.slane %v214, %v218
    %v220 = vlaneseq
    %v221 = vshrl.u32 %v220, 7
    %v222 = vsub.s32 1, %v221
    %v223 = vrot.slane %v214, %v222
    %v226 = vmul.f32 %v211, %v219
    %v227 = vmul.f32 %v212, %v223
    %228 = vset.pattern.permute.xlu0 6
    %229 = vperm.xlu0 %228, %v46
    %v230 = vpop.permute.xlu0 %229
    %v232 = vmul.f32 %v226, %v230
    %v233 = vmul.f32 %v227, %v230
    %v234 = vadd.f32 %v204, %v232
    %v235 = vadd.f32 %v205, %v233
    %236 = vrot.lane.b32.xlu0 %v44, 112
    %v237 = vpop.permute.xlu0 %236
    %238 = vrot.lane.b32.xlu0 %v45, 112
    %v239 = vpop.permute.xlu0 %238
    %vm240 = vcmp.lt.s32.totalorder %v60, 112
    %v241 = vsel %vm240, %v237, %v239
    %v242 = vsel %vm240, %v239, %v237
    %s243 = scalar_lea.vmem [#allocation5], 7
    %v244 = vld [vmem:[%s243] ss:$8 sm:$0x3]
    %v246 = vlaneseq
    %v247 = vshrl.u32 %v246, 7
    %v248 = vsub.s32 0, %v247
    %v249 = vrot.slane %v244, %v248
    %v250 = vlaneseq
    %v251 = vshrl.u32 %v250, 7
    %v252 = vsub.s32 1, %v251
    %v253 = vrot.slane %v244, %v252
    %v256 = vmul.f32 %v241, %v249
    %v257 = vmul.f32 %v242, %v253
    %258 = vset.pattern.permute.xlu0 7
    %259 = vperm.xlu0 %258, %v46
    %v260 = vpop.permute.xlu0 %259
    %v262 = vmul.f32 %v256, %v260
    %v263 = vmul.f32 %v257, %v260
    %v264 = vadd.f32 %v234, %v262
    %v265 = vadd.f32 %v235, %v263
    %266 = vrot.lane.b32.xlu0 %v44, 111
    %v267 = vpop.permute.xlu0 %266
    %268 = vrot.lane.b32.xlu0 %v45, 111
    %v269 = vpop.permute.xlu0 %268
    %vm270 = vcmp.lt.s32.totalorder %v60, 111
    %v271 = vsel %vm270, %v267, %v269
    %v272 = vsel %vm270, %v269, %v267
    %s273 = scalar_lea.vmem [#allocation5], 16
    %v274 = vld [vmem:[%s273] ss:$8 sm:$0x3]
    %v276 = vlaneseq
    %v277 = vshrl.u32 %v276, 7
    %v278 = vsub.s32 0, %v277
    %v279 = vrot.slane %v274, %v278
    %v280 = vlaneseq
    %v281 = vshrl.u32 %v280, 7
    %v282 = vsub.s32 1, %v281
    %v283 = vrot.slane %v274, %v282
    %v286 = vmul.f32 %v271, %v279
    %v287 = vmul.f32 %v272, %v283
    %288 = vset.pattern.permute.xlu0 8
    %289 = vperm.xlu0 %288, %v46
    %v290 = vpop.permute.xlu0 %289
    %v292 = vmul.f32 %v286, %v290
    %v293 = vmul.f32 %v287, %v290
    %v294 = vadd.f32 %v264, %v292
    %v295 = vadd.f32 %v265, %v293
    %vm296 = vcmask 31744
    %v298 = vsel %vm296, %v47, 0
    %vm300 = vcmask 1043456
    %v302 = vsel %vm300, %v294, 0
    %v305 = vsel %vm300, %v295, 0
    %307 = vmatprep.subr.mxu0 %v305
    %308 = vmatpush1.msra.mxu0 %v302
    %309 = vmatprep.subr.mxu0 0.0
    %310 = vmatpush1.msra.mxu0 0.0
    %311 = vmatprep.subr.mxu0 0.0
    %312 = vmatpush1.msra.mxu0 0.0
    %313 = vmatprep.subr.mxu0 0.0
    %314 = vmatpush1.msra.mxu0 0.0
    %315 = vmatprep.subr.mxu0 0.0
    %316 = vmatpush1.msra.mxu0 0.0
    %317 = vmatprep.subr.mxu0 0.0
    %318 = vmatpush1.msra.mxu0 0.0
    %319 = vmatprep.subr.mxu0 0.0
    %320 = vmatpush1.msra.mxu0 0.0
    %321 = vmatprep.subr.mxu0 0.0
    %322 = vmatpush1.msra.mxu0 0.0
    %323 = vmatprep.subr.mxu0 0.0
    %324 = vmatpush1.msra.mxu0 0.0
    %325 = vmatprep.subr.mxu0 0.0
    %326 = vmatpush1.msra.mxu0 0.0
    %327 = vmatprep.subr.mxu0 0.0
    %328 = vmatpush1.msra.mxu0 0.0
    %329 = vmatprep.subr.mxu0 0.0
    %330 = vmatpush1.msra.mxu0 0.0
    %331 = vmatprep.subr.mxu0 0.0
    %332 = vmatpush1.msra.mxu0 0.0
    %333 = vmatprep.subr.mxu0 0.0
    %334 = vmatpush1.msra.mxu0 0.0
    %335 = vmatprep.subr.mxu0 0.0
    %336 = vmatpush1.msra.mxu0 0.0
    %337 = vmatprep.subr.mxu0 0.0
    %338 = vmatpush1.msra.mxu0 0.0
    %339 = vmatprep.subr.mxu0 0.0
    %340 = vmatpush1.msra.mxu0 0.0
    %341 = vmatprep.subr.mxu0 0.0
    %342 = vmatpush1.msra.mxu0 0.0
    %343 = vmatprep.subr.mxu0 0.0
    %344 = vmatpush1.msra.mxu0 0.0
    %345 = vmatprep.subr.mxu0 0.0
    %346 = vmatpush1.msra.mxu0 0.0
    %347 = vmatprep.subr.mxu0 0.0
    %348 = vmatpush1.msra.mxu0 0.0
    %349 = vmatprep.subr.mxu0 0.0
    %350 = vmatpush1.msra.mxu0 0.0
    %351 = vmatprep.subr.mxu0 0.0
    %352 = vmatpush1.msra.mxu0 0.0
    %353 = vmatprep.subr.mxu0 0.0
    %354 = vmatpush1.msra.mxu0 0.0
    %355 = vmatprep.subr.mxu0 0.0
    %356 = vmatpush1.msra.mxu0 0.0
    %357 = vmatprep.subr.mxu0 0.0
    %358 = vmatpush1.msra.mxu0 0.0
    %359 = vmatprep.subr.mxu0 0.0
    %360 = vmatpush1.msra.mxu0 0.0
    %361 = vmatprep.subr.mxu0 0.0
    %362 = vmatpush1.msra.mxu0 0.0
    %363 = vmatprep.subr.mxu0 0.0
    %364 = vmatpush1.msra.mxu0 0.0
    %365 = vmatprep.subr.mxu0 0.0
    %366 = vmatpush1.msra.mxu0 0.0
    %367 = vmatprep.subr.mxu0 0.0
    %368 = vmatpush1.msra.mxu0 0.0
    %369 = vmatprep.subr.mxu0 0.0
    %370 = vmatpush1.msra.mxu0 0.0
    %371 = vmatprep.mubr.f32.mxu0 0.0
    %372 = vmatmul.mubr.f32.gmra.mrb[0].mxu0 %v298
    %v373 = vpop.f32.mrb[0].mxu0
    %v374 = vadd.f32 0.0, %v373
    %v375 = vpop.f32.mrb[0].mxu0
    %v376 = vadd.f32 0.0, %v375
    %377 = vdwg.mxu0
    %378 = vst [vmem:[#allocation7] sm:$0xff] %v374
    %379 = vst [vmem:[#allocation7 + $0x8] sm:$0xff] %v376
    %v380 = vrot.slane %v294, 4
    %v381 = vrot.slane %v295, 4
    %v382 = vsel %vm300, %v380, 0
    %v384 = vsel %vm300, %v381, 0
    %386 = vmatprep.subr.mxu0 %v384
    %387 = vmatpush1.msra.mxu0 %v382
    %388 = vmatprep.subr.mxu0 0.0
    %389 = vmatpush1.msra.mxu0 0.0
    %390 = vmatprep.subr.mxu0 0.0
    %391 = vmatpush1.msra.mxu0 0.0
    %392 = vmatprep.subr.mxu0 0.0
    %393 = vmatpush1.msra.mxu0 0.0
    %394 = vmatprep.subr.mxu0 0.0
    %395 = vmatpush1.msra.mxu0 0.0
    %396 = vmatprep.subr.mxu0 0.0
    %397 = vmatpush1.msra.mxu0 0.0
    %398 = vmatprep.subr.mxu0 0.0
    %399 = vmatpush1.msra.mxu0 0.0
    %400 = vmatprep.subr.mxu0 0.0
    %401 = vmatpush1.msra.mxu0 0.0
    %402 = vmatprep.subr.mxu0 0.0
    %403 = vmatpush1.msra.mxu0 0.0
    %404 = vmatprep.subr.mxu0 0.0
    %405 = vmatpush1.msra.mxu0 0.0
    %406 = vmatprep.subr.mxu0 0.0
    %407 = vmatpush1.msra.mxu0 0.0
    %408 = vmatprep.subr.mxu0 0.0
    %409 = vmatpush1.msra.mxu0 0.0
    %410 = vmatprep.subr.mxu0 0.0
    %411 = vmatpush1.msra.mxu0 0.0
    %412 = vmatprep.subr.mxu0 0.0
    %413 = vmatpush1.msra.mxu0 0.0
    %414 = vmatprep.subr.mxu0 0.0
    %415 = vmatpush1.msra.mxu0 0.0
    %416 = vmatprep.subr.mxu0 0.0
    %417 = vmatpush1.msra.mxu0 0.0
    %418 = vmatprep.subr.mxu0 0.0
    %419 = vmatpush1.msra.mxu0 0.0
    %420 = vmatprep.subr.mxu0 0.0
    %421 = vmatpush1.msra.mxu0 0.0
    %422 = vmatprep.subr.mxu0 0.0
    %423 = vmatpush1.msra.mxu0 0.0
    %424 = vmatprep.subr.mxu0 0.0
    %425 = vmatpush1.msra.mxu0 0.0
    %426 = vmatprep.subr.mxu0 0.0
    %427 = vmatpush1.msra.mxu0 0.0
    %428 = vmatprep.subr.mxu0 0.0
    %429 = vmatpush1.msra.mxu0 0.0
    %430 = vmatprep.subr.mxu0 0.0
    %431 = vmatpush1.msra.mxu0 0.0
    %432 = vmatprep.subr.mxu0 0.0
    %433 = vmatpush1.msra.mxu0 0.0
    %434 = vmatprep.subr.mxu0 0.0
    %435 = vmatpush1.msra.mxu0 0.0
    %436 = vmatprep.subr.mxu0 0.0
    %437 = vmatpush1.msra.mxu0 0.0
    %438 = vmatprep.subr.mxu0 0.0
    %439 = vmatpush1.msra.mxu0 0.0
    %440 = vmatprep.subr.mxu0 0.0
    %441 = vmatpush1.msra.mxu0 0.0
    %442 = vmatprep.subr.mxu0 0.0
    %443 = vmatpush1.msra.mxu0 0.0
    %444 = vmatprep.subr.mxu0 0.0
    %445 = vmatpush1.msra.mxu0 0.0
    %446 = vmatprep.subr.mxu0 0.0
    %447 = vmatpush1.msra.mxu0 0.0
    %448 = vmatprep.subr.mxu0 0.0
    %449 = vmatpush1.msra.mxu0 0.0
    %450 = vmatprep.mubr.f32.mxu0 0.0
    %451 = vmatmul.mubr.f32.gmra.mrb[0].mxu0 %v298
    %v452 = vpop.f32.mrb[0].mxu0
    %v453 = vadd.f32 0.0, %v452
    %v454 = vpop.f32.mrb[0].mxu0
    %v455 = vadd.f32 0.0, %v454
    %456 = vdwg.mxu0
    %457 = vst [vmem:[#allocation7 + $0x10] sm:$0xff] %v453
    %458 = vst [vmem:[#allocation7 + $0x18] sm:$0xff] %v455
    // Predicated region
    $region26: #{tpu_custom_call.1} parent=1 // pred_check
      _
    $region27: #{tpu_custom_call.1} parent=1 // pred_check_branch
      %460 = sbr.rel (0) target = $region29
    $region28: #{tpu_custom_call.1} parent=1 // pred_region
      %s462 = ssub.s32 512, 512
      %463 = vsyncadd [#allocation4], %s462
      %s464 = sshll.u32 [#allocation7], 4
      %s465 = int_to_ptr.vmem [resolvable:$true] %s464
      %470 = dma.vmem_to_hbm [thread:$0]  %s465, 512, %s4, [#allocation4], 256, 256, 16
    $region29: #{tpu_custom_call.1} parent=1 // pred_fallthru
      _
    // Predicated region
    $region30: #{tpu_custom_call.1} parent=1 // pred_check
      _
    $region31: #{tpu_custom_call.1} parent=1 // pred_check_branch
      %472 = sbr.rel (0) target = $region33
    $region32: #{tpu_custom_call.1} parent=1 // pred_region
      %473 = dma.done [#allocation4], 512
    $region33: #{tpu_custom_call.1} parent=1 // pred_fallthru
      _
    %474 = vsyncpa [#allocation3], 1
    %475 = vsyncpa [#allocation6], 1
    %476 = vsyncpa [#allocation4], 1

</llo_original>
